<compile_context>
chip_gen: v5e
topology: v5e:2x2
jax: 0.10.0
libtpu: 0.0.40
codegen_flags: <defaults>
</compile_context>

<pallas_src>
import jax
import jax.numpy as jnp
from jax.experimental import pallas as pl
from jax.experimental.pallas import tpu as pltpu


def matmul_kernel(y_ref, w_ref, o_ref):
    # Single MXU matmul per grid step: (tm, K) @ (K, N) -> (tm, N).
    o_ref[...] = jnp.dot(
        y_ref[...], w_ref[...], preferred_element_type=jnp.float32
    ).astype(o_ref.dtype)


def _pick_tm(M):
    # Prefer large row tiles (HBM-roofline streaming), but keep >= 2 grid
    # steps when M allows so both v7x TensorCores get work.
    tm = 512
    while tm > 8 and M <= tm:
        tm //= 2
    return tm


def matmul(y, w, *, tm=None):
    M, K = y.shape
    K2, N = w.shape
    assert K == K2, f"inner dims mismatch: {K} vs {K2}"

    if tm is None:
        tm = _pick_tm(M)

    # Pad M up to a multiple of tm (handles arbitrary M; rows of zeros are
    # sliced off afterwards).
    grid_m = pl.cdiv(M, tm)
    M_pad = grid_m * tm
    if M_pad != M:
        y = jnp.pad(y, ((0, M_pad - M), (0, 0)))

    flops = 2 * M_pad * K * N
    bytes_accessed = (M_pad * K + K * N + M_pad * N) * jnp.dtype(y.dtype).itemsize

    out = pl.pallas_call(
        matmul_kernel,
        out_shape=jax.ShapeDtypeStruct((M_pad, N), y.dtype),
        grid_spec=pltpu.PrefetchScalarGridSpec(
            num_scalar_prefetch=0,
            grid=(grid_m,),
            in_specs=[
                # y: stream (tm, K) row blocks.
                pl.BlockSpec((tm, K), lambda i: (i, 0)),
                # weight: full (K, N), resident in VMEM across all steps.
                pl.BlockSpec((K, N), lambda i: (0, 0)),
            ],
            # out: lane-dense (tm, N) blocks, written once per step.
            out_specs=pl.BlockSpec((tm, N), lambda i: (i, 0)),
        ),
        compiler_params=pltpu.CompilerParams(
            dimension_semantics=("parallel",),
        ),
        cost_estimate=pl.CostEstimate(
            flops=flops, transcendentals=0, bytes_accessed=bytes_accessed
        ),
    )(y, w)

    if M_pad != M:
        out = out[:M]
    return out


class MatMulPallas:
    """JAX/Pallas equivalent of the PyTorch MatMul module."""

    def __init__(self):
        # Deterministic parameter init matching torch.ones(256, 256).
        self.weight = jnp.ones((256, 256), dtype=jnp.float32)

    def __call__(self, y):
        return matmul(y, self.weight)


if __name__ == "__main__":
    key = jax.random.PRNGKey(0)
    # Small-but-valid input: last dim must be 256 to match the weight.
    M, K = 512, 256
    y = jax.random.normal(key, (M, K), dtype=jnp.float32)

    model = MatMulPallas()
    out = model(y)
    out = jax.block_until_ready(out)

    # Sanity check against plain-JAX reference.
    ref = y @ model.weight
    assert out.shape == (M, 256), out.shape
    assert jnp.allclose(out, ref, atol=1e-3, rtol=1e-3), "mismatch vs reference"

    # Also exercise a ragged M (padding path).
    y2 = jax.random.normal(jax.random.PRNGKey(1), (100, K), dtype=jnp.float32)
    out2 = jax.block_until_ready(model(y2))
    assert out2.shape == (100, 256), out2.shape
    assert jnp.allclose(out2, y2 @ model.weight, atol=1e-3, rtol=1e-3)

    print("KERNEL_OK")
</pallas_src>

<mosaic_0001>
module attributes {stable_mosaic.version = 11 : i64} {
  func.func @matmul_kernel(%arg0: i32, %arg1: memref<256x256xf32, #tpu.memory_space<vmem>>, %arg2: memref<256x256xf32, #tpu.memory_space<vmem>>, %arg3: memref<256x256xf32, #tpu.memory_space<vmem>>) attributes {dimension_semantics = [#tpu.dimension_semantics<parallel>], iteration_bounds = array<i64: 2>, scalar_prefetch = 0 : i64, scratch_operands = 0 : i64, tpu.core_type = #tpu.core_type<tc>, window_params = [{transform_indices = @transform_0, window_bounds = array<i64: 256, 256>}, {pipeline_mode = #tpu.pipeline_mode<synchronous>, transform_indices = @transform_1, window_bounds = array<i64: 256, 256>}, {transform_indices = @transform_2, window_bounds = array<i64: 256, 256>}]} {
    %c0 = arith.constant 0 : index
    %c0_0 = arith.constant 0 : index
    %0 = vector.load %arg1[%c0, %c0_0] : memref<256x256xf32, #tpu.memory_space<vmem>>, vector<256x256xf32>
    %c0_1 = arith.constant 0 : index
    %c0_2 = arith.constant 0 : index
    %1 = vector.load %arg2[%c0_1, %c0_2] : memref<256x256xf32, #tpu.memory_space<vmem>>, vector<256x256xf32>
    %cst = arith.constant dense<0.000000e+00> : vector<256x256xf32>
    %2 = tpu.matmul %0, %1, %cst {dimension_numbers = #tpu.dot_dimension_numbers<[1], [0], [0], [1], [0, 0, 1, 1], [], []>} : vector<256x256xf32>, vector<256x256xf32>, vector<256x256xf32> -> vector<256x256xf32>
    %c0_3 = arith.constant 0 : index
    %c0_4 = arith.constant 0 : index
    %3 = vector.load %arg3[%c0_3, %c0_4] : memref<256x256xf32, #tpu.memory_space<vmem>>, vector<256x256xf32>
    tpu.vector_store %arg3[%c0_3, %c0_4], %2 {strides = array<i32>} : memref<256x256xf32, #tpu.memory_space<vmem>>, vector<256x256xf32>,
    return
  }
  func.func @transform_0(%arg0: i32) -> (i32, i32) {
    %c0_i32 = arith.constant 0 : i32
    %c0_i32_0 = arith.constant 0 : i32
    return %arg0, %c0_i32 : i32, i32
  }
  func.func @transform_1(%arg0: i32) -> (i32, i32) {
    %c0_i32 = arith.constant 0 : i32
    %c0_i32_0 = arith.constant 0 : i32
    %c0_i32_1 = arith.constant 0 : i32
    return %c0_i32, %c0_i32_0 : i32, i32
  }
  func.func @transform_2(%arg0: i32) -> (i32, i32) {
    %c0_i32 = arith.constant 0 : i32
    %c0_i32_0 = arith.constant 0 : i32
    return %arg0, %c0_i32 : i32, i32
  }
}

</mosaic_0001>

<llo_original>
// kernel: tpu_custom_call.1
$region0: #{tpu_custom_call.1}
  #allocation0 [shape = 'u32[]', space=smem, size = 0x4, offset = 0x4, fixed_abs, tag = 'smem constant byte address 0x4 - core index']
  #allocation1 [shape = 'u32[72,128]{1,0:T(1,128)}', space=vmem, size = 0x9000, scoped, tag = 'internal scratch']
  %s0 = inlined_call_operand.hbm [shape: f32[512,256], index: 0, kind: input, shape index: {}]
  %s1 = inlined_call_operand.hbm [shape: f32[256,256], index: 1, kind: input, shape index: {}]
  %s2 = inlined_call_operand.hbm [shape: f32[512,256], index: 2, kind: output, shape index: {}]
  %s3 = sld [smem:[#allocation0]]
  $region49: #{tpu_custom_call.1} parent=0
    _
  %s5 = ssub.s32 1, %s3
  %s6 = scalar_select 0, %s5, %s3
  $region1: #{tpu_custom_call.1} parent=0
    #allocation2 [shape = 'u8[524288]{0}', space=vmem, size = 0x80000, scoped, tag = 'input window, operand 0']
    #allocation3 [shape = 's32[2]{0}', space=sflag, size = 0x8, scoped, tag = 'scoped memory for tpu_custom_call.1']
    #allocation4 [shape = 's32[2]{0}', space=sflag, size = 0x8, scoped, tag = 'scoped memory for tpu_custom_call.1']
    #allocation5 [shape = 'u8[262144]{0}', space=vmem, size = 0x40000, scoped, tag = 'input window, operand 1, single buffered']
    #allocation6 [shape = 's32[1]{0}', space=sflag, size = 0x4, scoped, tag = 'scoped memory for tpu_custom_call.1']
    #allocation7 [shape = 'u8[524288]{0}', space=vmem, size = 0x80000, scoped, tag = 'output window, operand 0']
    %7 = vsyncpa [#allocation3], 0
    %s8 = scalar_lea.sflag [#allocation3], 1
    %9 = vsyncpa %s8, 0
    %10 = vsyncpa [#allocation6], 0
    %11 = vsyncpa [#allocation4], 0
    %s12 = scalar_lea.sflag [#allocation4], 1
    %13 = vsyncpa %s12, 0
    loop: start=0, step=1, limit=4
    $region2: #{tpu_custom_call.1} parent=1 // loop_pre_header
      _
    $region3: #{tpu_custom_call.1} parent=1 // loop_header
      %s15 = sphi 0, %s19
      %p16 = scmp.ge.s32.totalorder %s15, 4
      %s25 = sphi 0, %s27
      %s28 = sphi 0, %s25
      %s29 = sphi 0, %s28
      %s45 = sphi 0, %s29
      %s49 = sphi 0, %s49
      %s51 = sphi 0, %s49
      %s52 = sphi 0, %s51
      %s66 = sphi 0, %s52
      %s72 = sphi 0, %s74
      %s75 = sphi 0, %s72
      %s76 = sphi 0, %s75
      %s92 = sphi 0, %s76
    $region4: #{tpu_custom_call.1} parent=1 // loop_header_branch
      %18 = sbr.rel (%p16) target = $region8
    $region5: #{tpu_custom_call.1} parent=1 // loop_body
      %s20 = ssub.s32 %s15, 1
      %s21 = ssub.s32 %s15, 2
      %s22 = sadd.s32 %s15, 1
      %s23 = ssub.s32 %s15, %s22
      %p24 = scmp.eq.s32.totalorder %s23, 0
      %s26 = sadd.s32 %s25, 1
      %s27 = scalar_select %p24, %s25, %s26
      %p30 = pneg %p24
      %p31 = scmp.eq.s32.totalorder %s15, 1
      %p32 = por %p30, %p31
      %p33 = scmp.ne.s32.totalorder %s25, %s28
      %p34 = scmp.eq.s32.totalorder %s15, 0
      %p35 = por %p33, %p34
      %p36 = scmp.ne.s32.totalorder %s25, %s28
      %p37 = scmp.eq.s32.totalorder %s20, 1
      %p38 = por %p36, %p37
      %p39 = scmp.ne.s32.totalorder %s28, %s29
      %p40 = scmp.eq.s32.totalorder %s20, 0
      %p41 = por %p39, %p40
      %p42 = scmp.ne.s32.totalorder %s28, %s29
      %p43 = scmp.eq.s32.totalorder %s21, 1
      %p44 = por %p42, %p43
      %p46 = scmp.ne.s32.totalorder %s29, %s45
      %p47 = scmp.eq.s32.totalorder %s21, 0
      %p48 = por %p46, %p47
      %s50 = sadd.s32 %s49, 1
      %p53 = scmp.eq.s32.totalorder %s15, 1
      %p54 = scmp.ne.s32.totalorder %s49, %s51
      %p55 = scmp.eq.s32.totalorder %s15, 0
      %p56 = por %p54, %p55
      %p57 = scmp.ne.s32.totalorder %s49, %s51
      %p58 = scmp.eq.s32.totalorder %s20, 1
      %p59 = por %p57, %p58
      %p60 = scmp.ne.s32.totalorder %s51, %s52
      %p61 = scmp.eq.s32.totalorder %s20, 0
      %p62 = por %p60, %p61
      %p63 = scmp.ne.s32.totalorder %s51, %s52
      %p64 = scmp.eq.s32.totalorder %s21, 1
      %p65 = por %p63, %p64
      %p67 = scmp.ne.s32.totalorder %s52, %s66
      %p68 = scmp.eq.s32.totalorder %s21, 0
      %p69 = por %p67, %p68
      %s70 = ssub.s32 %s15, %s22
      %p71 = scmp.eq.s32.totalorder %s70, 0
      %s73 = sadd.s32 %s72, 1
      %s74 = scalar_select %p71, %s72, %s73
      %p77 = pneg %p71
      %p78 = scmp.eq.s32.totalorder %s15, 1
      %p79 = por %p77, %p78
      %p80 = scmp.ne.s32.totalorder %s72, %s75
      %p81 = scmp.eq.s32.totalorder %s15, 0
      %p82 = por %p80, %p81
      %p83 = scmp.ne.s32.totalorder %s72, %s75
      %p84 = scmp.eq.s32.totalorder %s20, 1
      %p85 = por %p83, %p84
      %p86 = scmp.ne.s32.totalorder %s75, %s76
      %p87 = scmp.eq.s32.totalorder %s20, 0
      %p88 = por %p86, %p87
      %p89 = scmp.ne.s32.totalorder %s75, %s76
      %p90 = scmp.eq.s32.totalorder %s21, 1
      %p91 = por %p89, %p90
      %p93 = scmp.ne.s32.totalorder %s76, %s92
      %p94 = scmp.eq.s32.totalorder %s21, 0
      %p95 = por %p93, %p94
      %p96 = scmp.le.s32.totalorder 1, %s15
      %p97 = scmp.lt.s32.totalorder %s15, 3
      %p98 = pnand %p96, %p97
      %p99 = pneg %p98
      // Predicated region
      $region9: #{tpu_custom_call.1} parent=5 // pred_check
        _
      $region10: #{tpu_custom_call.1} parent=5 // pred_check_branch
        %101 = sbr.rel (%p98) target = $region12
      $region11: #{tpu_custom_call.1} parent=5 // pred_region
        %s102 = ssub.s32 %s15, 1
        // Predicated region
        $region13: #{tpu_custom_call.1} parent=11 // pred_check
          %p103 = pneg %p62
        $region14: #{tpu_custom_call.1} parent=11 // pred_check_branch
          %105 = sbr.rel (%p103) target = $region16
        $region15: #{tpu_custom_call.1} parent=11 // pred_region
          %107 = vsyncadd [#allocation6], 0
          %s108 = sshll.u32 %s1, 4
          %s109 = int_to_ptr.hbm [resolvable:$true] %s108
          %s110 = sshll.u32 [#allocation5], 4
          %s111 = int_to_ptr.vmem [resolvable:$true] %s110
          %116 = dma.hbm_to_vmem [thread:$0]  %s109, 8192, %s111, [#allocation6], 256, 256, 16
        $region16: #{tpu_custom_call.1} parent=11 // pred_fallthru
          _
      $region12: #{tpu_custom_call.1} parent=5 // pred_fallthru
        _
      %p117 = scmp.lt.s32.totalorder %s15, 2
      // Predicated region
      $region17: #{tpu_custom_call.1} parent=5 // pred_check
        %p118 = pneg %p117
      $region18: #{tpu_custom_call.1} parent=5 // pred_check_branch
        %120 = sbr.rel (%p118) target = $region20
      $region19: #{tpu_custom_call.1} parent=5 // pred_region
        // Predicated region
        $region21: #{tpu_custom_call.1} parent=19 // pred_check
          %p121 = pneg %p35
        $region22: #{tpu_custom_call.1} parent=19 // pred_check_branch
          %123 = sbr.rel (%p121) target = $region24
        $region23: #{tpu_custom_call.1} parent=19 // pred_region
          %s124 = sand.u32 %s25, 1
          %s125 = scalar_lea.sflag [#allocation3], %s124
          %s126 = sand.u32 %s25, 1
          %s127 = smul.addr %s126, 512
          %s128 = scalar_lea.vmem [#allocation2], %s127
          %s129 = smul.u32 32, %s15
          %131 = vsyncadd %s125, 0
          %s132 = smul.addr %s129, 2
          %s133 = smul.addr %s132, 8
          %s134 = scalar_lea.hbm %s0, %s133
          %s135 = sshll.u32 %s134, 4
          %s136 = int_to_ptr.hbm [resolvable:$true] %s135
          %s137 = sshll.u32 %s128, 4
          %s138 = int_to_ptr.vmem [resolvable:$true] %s137
          %143 = dma.hbm_to_vmem [thread:$0]  %s136, 8192, %s138, %s125, 256, 256, 16
        $region24: #{tpu_custom_call.1} parent=19 // pred_fallthru
          _
      $region20: #{tpu_custom_call.1} parent=5 // pred_fallthru
        _
      %p144 = scmp.le.s32.totalorder 1, %s15
      %p145 = scmp.lt.s32.totalorder %s15, 3
      %p146 = pnand %p144, %p145
      %p147 = pneg %p146
      // Predicated region
      $region25: #{tpu_custom_call.1} parent=5 // pred_check
        _
      $region26: #{tpu_custom_call.1} parent=5 // pred_check_branch
        %149 = sbr.rel (%p146) target = $region28
      $region27: #{tpu_custom_call.1} parent=5 // pred_region
        %s150 = ssub.s32 %s15, 1
        %s151 = sand.u32 %s28, 1
        %s152 = scalar_lea.sflag [#allocation3], %s151
        %s153 = sand.u32 %s28, 1
        %s154 = smul.addr %s153, 512
        %s155 = scalar_lea.vmem [#allocation2], %s154
        // Predicated region
        $region29: #{tpu_custom_call.1} parent=27 // pred_check
          %p156 = pneg %p41
        $region30: #{tpu_custom_call.1} parent=27 // pred_check_branch
          %158 = sbr.rel (%p156) target = $region32
        $region31: #{tpu_custom_call.1} parent=27 // pred_region
          %160 = dma.done %s152, 8192
        $region32: #{tpu_custom_call.1} parent=27 // pred_fallthru
          _
        // Predicated region
        $region33: #{tpu_custom_call.1} parent=27 // pred_check
          %p161 = pneg %p62
        $region34: #{tpu_custom_call.1} parent=27 // pred_check_branch
          %163 = sbr.rel (%p161) target = $region36
        $region35: #{tpu_custom_call.1} parent=27 // pred_region
          %165 = dma.done [#allocation6], 8192
        $region36: #{tpu_custom_call.1} parent=27 // pred_fallthru
          _
        %s166 = sand.u32 %s28, 1
        %s167 = scalar_lea.sflag [#allocation3], %s166
        %s168 = sand.u32 %s28, 1
        %s169 = smul.addr %s168, 512
        %s170 = scalar_lea.vmem [#allocation2], %s169
        %p171 = pneg %p41
        %p172 = pneg %p38
        %p173 = pneg %p62
        %p174 = pneg %p59
        %p175 = pneg %p88
        %p176 = pneg %p85
        %s177 = sand.u32 %s75, 1
        %s178 = scalar_lea.sflag [#allocation4], %s177
        %s179 = sand.u32 %s75, 1
        %s180 = smul.addr %s179, 512
        %s181 = scalar_lea.vmem [#allocation7], %s180
        %s182 = smul.u32 32, %s20
        %s183 = smul.u32 32, %s20
        %v184 = vld [vmem:[%s155] sm:$0xff]
        %v185 = vld [vmem:[%s155 + $0x8] sm:$0xff]
        %v186 = vld [vmem:[%s155 + $0x10] sm:$0xff]
        %v187 = vld [vmem:[%s155 + $0x18] sm:$0xff]
        %v188 = vld [vmem:[%s155 + $0x20] sm:$0xff]
        %v189 = vld [vmem:[%s155 + $0x28] sm:$0xff]
        %v190 = vld [vmem:[%s155 + $0x30] sm:$0xff]
        %v191 = vld [vmem:[%s155 + $0x38] sm:$0xff]
        %v192 = vld [vmem:[%s155 + $0x40] sm:$0xff]
        %v193 = vld [vmem:[%s155 + $0x48] sm:$0xff]
        %v194 = vld [vmem:[%s155 + $0x50] sm:$0xff]
        %v195 = vld [vmem:[%s155 + $0x58] sm:$0xff]
        %v196 = vld [vmem:[%s155 + $0x60] sm:$0xff]
        %v197 = vld [vmem:[%s155 + $0x68] sm:$0xff]
        %v198 = vld [vmem:[%s155 + $0x70] sm:$0xff]
        %v199 = vld [vmem:[%s155 + $0x78] sm:$0xff]
        %v200 = vld [vmem:[%s155 + $0x80] sm:$0xff]
        %v201 = vld [vmem:[%s155 + $0x88] sm:$0xff]
        %v202 = vld [vmem:[%s155 + $0x90] sm:$0xff]
        %v203 = vld [vmem:[%s155 + $0x98] sm:$0xff]
        %v204 = vld [vmem:[%s155 + $0xa0] sm:$0xff]
        %v205 = vld [vmem:[%s155 + $0xa8] sm:$0xff]
        %v206 = vld [vmem:[%s155 + $0xb0] sm:$0xff]
        %v207 = vld [vmem:[%s155 + $0xb8] sm:$0xff]
        %v208 = vld [vmem:[%s155 + $0xc0] sm:$0xff]
        %v209 = vld [vmem:[%s155 + $0xc8] sm:$0xff]
        %v210 = vld [vmem:[%s155 + $0xd0] sm:$0xff]
        %v211 = vld [vmem:[%s155 + $0xd8] sm:$0xff]
        %v212 = vld [vmem:[%s155 + $0xe0] sm:$0xff]
        %v213 = vld [vmem:[%s155 + $0xe8] sm:$0xff]
        %v214 = vld [vmem:[%s155 + $0xf0] sm:$0xff]
        %v215 = vld [vmem:[%s155 + $0xf8] sm:$0xff]
        %v216 = vld [vmem:[%s155 + $0x100] sm:$0xff]
        %v217 = vld [vmem:[%s155 + $0x108] sm:$0xff]
        %v218 = vld [vmem:[%s155 + $0x110] sm:$0xff]
        %v219 = vld [vmem:[%s155 + $0x118] sm:$0xff]
        %v220 = vld [vmem:[%s155 + $0x120] sm:$0xff]
        %v221 = vld [vmem:[%s155 + $0x128] sm:$0xff]
        %v222 = vld [vmem:[%s155 + $0x130] sm:$0xff]
        %v223 = vld [vmem:[%s155 + $0x138] sm:$0xff]
        %v224 = vld [vmem:[%s155 + $0x140] sm:$0xff]
        %v225 = vld [vmem:[%s155 + $0x148] sm:$0xff]
        %v226 = vld [vmem:[%s155 + $0x150] sm:$0xff]
        %v227 = vld [vmem:[%s155 + $0x158] sm:$0xff]
        %v228 = vld [vmem:[%s155 + $0x160] sm:$0xff]
        %v229 = vld [vmem:[%s155 + $0x168] sm:$0xff]
        %v230 = vld [vmem:[%s155 + $0x170] sm:$0xff]
        %v231 = vld [vmem:[%s155 + $0x178] sm:$0xff]
        %v232 = vld [vmem:[%s155 + $0x180] sm:$0xff]
        %v233 = vld [vmem:[%s155 + $0x188] sm:$0xff]
        %v234 = vld [vmem:[%s155 + $0x190] sm:$0xff]
        %v235 = vld [vmem:[%s155 + $0x198] sm:$0xff]
        %v236 = vld [vmem:[%s155 + $0x1a0] sm:$0xff]
        %v237 = vld [vmem:[%s155 + $0x1a8] sm:$0xff]
        %v238 = vld [vmem:[%s155 + $0x1b0] sm:$0xff]
        %v239 = vld [vmem:[%s155 + $0x1b8] sm:$0xff]
        %v240 = vld [vmem:[%s155 + $0x1c0] sm:$0xff]
        %v241 = vld [vmem:[%s155 + $0x1c8] sm:$0xff]
        %v242 = vld [vmem:[%s155 + $0x1d0] sm:$0xff]
        %v243 = vld [vmem:[%s155 + $0x1d8] sm:$0xff]
        %v244 = vld [vmem:[%s155 + $0x1e0] sm:$0xff]
        %v245 = vld [vmem:[%s155 + $0x1e8] sm:$0xff]
        %v246 = vld [vmem:[%s155 + $0x1f0] sm:$0xff]
        %v247 = vld [vmem:[%s155 + $0x1f8] sm:$0xff]
        %v248 = vld [vmem:[#allocation5] sm:$0xff]
        %v249 = vld [vmem:[#allocation5 + $0x8] sm:$0xff]
        %v250 = vld [vmem:[#allocation5 + $0x10] sm:$0xff]
        %v251 = vld [vmem:[#allocation5 + $0x18] sm:$0xff]
        %v252 = vld [vmem:[#allocation5 + $0x20] sm:$0xff]
        %v253 = vld [vmem:[#allocation5 + $0x28] sm:$0xff]
        %v254 = vld [vmem:[#allocation5 + $0x30] sm:$0xff]
        %v255 = vld [vmem:[#allocation5 + $0x38] sm:$0xff]
        %v256 = vld [vmem:[#allocation5 + $0x40] sm:$0xff]
        %v257 = vld [vmem:[#allocation5 + $0x48] sm:$0xff]
        %v258 = vld [vmem:[#allocation5 + $0x50] sm:$0xff]
        %v259 = vld [vmem:[#allocation5 + $0x58] sm:$0xff]
        %v260 = vld [vmem:[#allocation5 + $0x60] sm:$0xff]
        %v261 = vld [vmem:[#allocation5 + $0x68] sm:$0xff]
        %v262 = vld [vmem:[#allocation5 + $0x70] sm:$0xff]
        %v263 = vld [vmem:[#allocation5 + $0x78] sm:$0xff]
        %v264 = vld [vmem:[#allocation5 + $0x80] sm:$0xff]
        %v265 = vld [vmem:[#allocation5 + $0x88] sm:$0xff]
        %v266 = vld [vmem:[#allocation5 + $0x90] sm:$0xff]
        %v267 = vld [vmem:[#allocation5 + $0x98] sm:$0xff]
        %v268 = vld [vmem:[#allocation5 + $0xa0] sm:$0xff]
        %v269 = vld [vmem:[#allocation5 + $0xa8] sm:$0xff]
        %v270 = vld [vmem:[#allocation5 + $0xb0] sm:$0xff]
        %v271 = vld [vmem:[#allocation5 + $0xb8] sm:$0xff]
        %v272 = vld [vmem:[#allocation5 + $0xc0] sm:$0xff]
        %v273 = vld [vmem:[#allocation5 + $0xc8] sm:$0xff]
        %v274 = vld [vmem:[#allocation5 + $0xd0] sm:$0xff]
        %v275 = vld [vmem:[#allocation5 + $0xd8] sm:$0xff]
        %v276 = vld [vmem:[#allocation5 + $0xe0] sm:$0xff]
        %v277 = vld [vmem:[#allocation5 + $0xe8] sm:$0xff]
        %v278 = vld [vmem:[#allocation5 + $0xf0] sm:$0xff]
        %v279 = vld [vmem:[#allocation5 + $0xf8] sm:$0xff]
        %v280 = vld [vmem:[#allocation5 + $0x100] sm:$0xff]
        %v281 = vld [vmem:[#allocation5 + $0x108] sm:$0xff]
        %v282 = vld [vmem:[#allocation5 + $0x110] sm:$0xff]
        %v283 = vld [vmem:[#allocation5 + $0x118] sm:$0xff]
        %v284 = vld [vmem:[#allocation5 + $0x120] sm:$0xff]
        %v285 = vld [vmem:[#allocation5 + $0x128] sm:$0xff]
        %v286 = vld [vmem:[#allocation5 + $0x130] sm:$0xff]
        %v287 = vld [vmem:[#allocation5 + $0x138] sm:$0xff]
        %v288 = vld [vmem:[#allocation5 + $0x140] sm:$0xff]
        %v289 = vld [vmem:[#allocation5 + $0x148] sm:$0xff]
        %v290 = vld [vmem:[#allocation5 + $0x150] sm:$0xff]
        %v291 = vld [vmem:[#allocation5 + $0x158] sm:$0xff]
        %v292 = vld [vmem:[#allocation5 + $0x160] sm:$0xff]
        %v293 = vld [vmem:[#allocation5 + $0x168] sm:$0xff]
        %v294 = vld [vmem:[#allocation5 + $0x170] sm:$0xff]
        %v295 = vld [vmem:[#allocation5 + $0x178] sm:$0xff]
        %v296 = vld [vmem:[#allocation5 + $0x180] sm:$0xff]
        %v297 = vld [vmem:[#allocation5 + $0x188] sm:$0xff]
        %v298 = vld [vmem:[#allocation5 + $0x190] sm:$0xff]
        %v299 = vld [vmem:[#allocation5 + $0x198] sm:$0xff]
        %v300 = vld [vmem:[#allocation5 + $0x1a0] sm:$0xff]
        %v301 = vld [vmem:[#allocation5 + $0x1a8] sm:$0xff]
        %v302 = vld [vmem:[#allocation5 + $0x1b0] sm:$0xff]
        %v303 = vld [vmem:[#allocation5 + $0x1b8] sm:$0xff]
        %v304 = vld [vmem:[#allocation5 + $0x1c0] sm:$0xff]
        %v305 = vld [vmem:[#allocation5 + $0x1c8] sm:$0xff]
        %v306 = vld [vmem:[#allocation5 + $0x1d0] sm:$0xff]
        %v307 = vld [vmem:[#allocation5 + $0x1d8] sm:$0xff]
        %v308 = vld [vmem:[#allocation5 + $0x1e0] sm:$0xff]
        %v309 = vld [vmem:[#allocation5 + $0x1e8] sm:$0xff]
        %v310 = vld [vmem:[#allocation5 + $0x1f0] sm:$0xff]
        %v311 = vld [vmem:[#allocation5 + $0x1f8] sm:$0xff]
        %312 = vmatpush.msra.mxu0 %v278
        %313 = vmatpush.msra.mxu0 %v276
        %314 = vmatpush.msra.mxu0 %v274
        %315 = vmatpush.msra.mxu0 %v272
        %316 = vmatpush.msra.mxu0 %v270
        %317 = vmatpush.msra.mxu0 %v268
        %318 = vmatpush.msra.mxu0 %v266
        %319 = vmatpush.msra.mxu0 %v264
        %320 = vmatpush.msra.mxu0 %v262
        %321 = vmatpush.msra.mxu0 %v260
        %322 = vmatpush.msra.mxu0 %v258
        %323 = vmatpush.msra.mxu0 %v256
        %324 = vmatpush.msra.mxu0 %v254
        %325 = vmatpush.msra.mxu0 %v252
        %326 = vmatpush.msra.mxu0 %v250
        %327 = vmatpush.msra.mxu0 %v248
        %328 = vmatmul.f32.gmra.mxu0 %v184
        %v329 = vpop.f32.mrf.mxu0
        %v330 = vadd.f32 0.0, %v329
        %331 = vmatmul.f32.gmra.mxu0 %v186
        %v332 = vpop.f32.mrf.mxu0
        %v333 = vadd.f32 0.0, %v332
        %334 = vmatmul.f32.gmra.mxu0 %v188
        %v335 = vpop.f32.mrf.mxu0
        %v336 = vadd.f32 0.0, %v335
        %337 = vmatmul.f32.gmra.mxu0 %v190
        %v338 = vpop.f32.mrf.mxu0
        %v339 = vadd.f32 0.0, %v338
        %340 = vmatmul.f32.gmra.mxu0 %v192
        %v341 = vpop.f32.mrf.mxu0
        %v342 = vadd.f32 0.0, %v341
        %343 = vmatmul.f32.gmra.mxu0 %v194
        %v344 = vpop.f32.mrf.mxu0
        %v345 = vadd.f32 0.0, %v344
        %346 = vmatmul.f32.gmra.mxu0 %v196
        %v347 = vpop.f32.mrf.mxu0
        %v348 = vadd.f32 0.0, %v347
        %349 = vmatmul.f32.gmra.mxu0 %v198
        %v350 = vpop.f32.mrf.mxu0
        %v351 = vadd.f32 0.0, %v350
        %352 = vmatmul.f32.gmra.mxu0 %v200
        %v353 = vpop.f32.mrf.mxu0
        %v354 = vadd.f32 0.0, %v353
        %355 = vmatmul.f32.gmra.mxu0 %v202
        %v356 = vpop.f32.mrf.mxu0
        %v357 = vadd.f32 0.0, %v356
        %358 = vmatmul.f32.gmra.mxu0 %v204
        %v359 = vpop.f32.mrf.mxu0
        %v360 = vadd.f32 0.0, %v359
        %361 = vmatmul.f32.gmra.mxu0 %v206
        %v362 = vpop.f32.mrf.mxu0
        %v363 = vadd.f32 0.0, %v362
        %364 = vmatmul.f32.gmra.mxu0 %v208
        %v365 = vpop.f32.mrf.mxu0
        %v366 = vadd.f32 0.0, %v365
        %367 = vmatmul.f32.gmra.mxu0 %v210
        %v368 = vpop.f32.mrf.mxu0
        %v369 = vadd.f32 0.0, %v368
        %370 = vmatmul.f32.gmra.mxu0 %v212
        %v371 = vpop.f32.mrf.mxu0
        %v372 = vadd.f32 0.0, %v371
        %373 = vmatmul.f32.gmra.mxu0 %v214
        %v374 = vpop.f32.mrf.mxu0
        %v375 = vadd.f32 0.0, %v374
        %376 = vmatmul.f32.gmra.mxu0 %v216
        %v377 = vpop.f32.mrf.mxu0
        %v378 = vadd.f32 0.0, %v377
        %379 = vmatmul.f32.gmra.mxu0 %v218
        %v380 = vpop.f32.mrf.mxu0
        %v381 = vadd.f32 0.0, %v380
        %382 = vmatmul.f32.gmra.mxu0 %v220
        %v383 = vpop.f32.mrf.mxu0
        %v384 = vadd.f32 0.0, %v383
        %385 = vmatmul.f32.gmra.mxu0 %v222
        %v386 = vpop.f32.mrf.mxu0
        %v387 = vadd.f32 0.0, %v386
        %388 = vmatmul.f32.gmra.mxu0 %v224
        %v389 = vpop.f32.mrf.mxu0
        %v390 = vadd.f32 0.0, %v389
        %391 = vmatmul.f32.gmra.mxu0 %v226
        %v392 = vpop.f32.mrf.mxu0
        %v393 = vadd.f32 0.0, %v392
        %394 = vmatmul.f32.gmra.mxu0 %v228
        %v395 = vpop.f32.mrf.mxu0
        %v396 = vadd.f32 0.0, %v395
        %397 = vmatmul.f32.gmra.mxu0 %v230
        %v398 = vpop.f32.mrf.mxu0
        %v399 = vadd.f32 0.0, %v398
        %400 = vmatmul.f32.gmra.mxu0 %v232
        %v401 = vpop.f32.mrf.mxu0
        %v402 = vadd.f32 0.0, %v401
        %403 = vmatmul.f32.gmra.mxu0 %v234
        %v404 = vpop.f32.mrf.mxu0
        %v405 = vadd.f32 0.0, %v404
        %406 = vmatmul.f32.gmra.mxu0 %v236
        %v407 = vpop.f32.mrf.mxu0
        %v408 = vadd.f32 0.0, %v407
        %409 = vmatmul.f32.gmra.mxu0 %v238
        %v410 = vpop.f32.mrf.mxu0
        %v411 = vadd.f32 0.0, %v410
        %412 = vmatmul.f32.gmra.mxu0 %v240
        %v413 = vpop.f32.mrf.mxu0
        %v414 = vadd.f32 0.0, %v413
        %415 = vmatmul.f32.gmra.mxu0 %v242
        %v416 = vpop.f32.mrf.mxu0
        %v417 = vadd.f32 0.0, %v416
        %418 = vmatmul.f32.gmra.mxu0 %v244
        %v419 = vpop.f32.mrf.mxu0
        %v420 = vadd.f32 0.0, %v419
        %421 = vmatmul.f32.gmra.mxu0 %v246
        %v422 = vpop.f32.mrf.mxu0
        %v423 = vadd.f32 0.0, %v422
        %424 = vdwg.mxu0
        %425 = vmatpush.msra.mxu0 %v310
        %426 = vmatpush.msra.mxu0 %v308
        %427 = vmatpush.msra.mxu0 %v306
        %428 = vmatpush.msra.mxu0 %v304
        %429 = vmatpush.msra.mxu0 %v302
        %430 = vmatpush.msra.mxu0 %v300
        %431 = vmatpush.msra.mxu0 %v298
        %432 = vmatpush.msra.mxu0 %v296
        %433 = vmatpush.msra.mxu0 %v294
        %434 = vmatpush.msra.mxu0 %v292
        %435 = vmatpush.msra.mxu0 %v290
        %436 = vmatpush.msra.mxu0 %v288
        %437 = vmatpush.msra.mxu0 %v286
        %438 = vmatpush.msra.mxu0 %v284
        %439 = vmatpush.msra.mxu0 %v282
        %440 = vmatpush.msra.mxu0 %v280
        %441 = vmatmul.f32.gmra.mxu0 %v185
        %v442 = vpop.f32.mrf.mxu0
        %v443 = vadd.f32 %v330, %v442
        %444 = vmatmul.f32.gmra.mxu0 %v187
        %v445 = vpop.f32.mrf.mxu0
        %v446 = vadd.f32 %v333, %v445
        %447 = vmatmul.f32.gmra.mxu0 %v189
        %v448 = vpop.f32.mrf.mxu0
        %v449 = vadd.f32 %v336, %v448
        %450 = vmatmul.f32.gmra.mxu0 %v191
        %v451 = vpop.f32.mrf.mxu0
        %v452 = vadd.f32 %v339, %v451
        %453 = vmatmul.f32.gmra.mxu0 %v193
        %v454 = vpop.f32.mrf.mxu0
        %v455 = vadd.f32 %v342, %v454
        %456 = vmatmul.f32.gmra.mxu0 %v195
        %v457 = vpop.f32.mrf.mxu0
        %v458 = vadd.f32 %v345, %v457
        %459 = vmatmul.f32.gmra.mxu0 %v197
        %v460 = vpop.f32.mrf.mxu0
        %v461 = vadd.f32 %v348, %v460
        %462 = vmatmul.f32.gmra.mxu0 %v199
        %v463 = vpop.f32.mrf.mxu0
        %v464 = vadd.f32 %v351, %v463
        %465 = vmatmul.f32.gmra.mxu0 %v201
        %v466 = vpop.f32.mrf.mxu0
        %v467 = vadd.f32 %v354, %v466
        %468 = vmatmul.f32.gmra.mxu0 %v203
        %v469 = vpop.f32.mrf.mxu0
        %v470 = vadd.f32 %v357, %v469
        %471 = vmatmul.f32.gmra.mxu0 %v205
        %v472 = vpop.f32.mrf.mxu0
        %v473 = vadd.f32 %v360, %v472
        %474 = vmatmul.f32.gmra.mxu0 %v207
        %v475 = vpop.f32.mrf.mxu0
        %v476 = vadd.f32 %v363, %v475
        %477 = vmatmul.f32.gmra.mxu0 %v209
        %v478 = vpop.f32.mrf.mxu0
        %v479 = vadd.f32 %v366, %v478
        %480 = vmatmul.f32.gmra.mxu0 %v211
        %v481 = vpop.f32.mrf.mxu0
        %v482 = vadd.f32 %v369, %v481
        %483 = vmatmul.f32.gmra.mxu0 %v213
        %v484 = vpop.f32.mrf.mxu0
        %v485 = vadd.f32 %v372, %v484
        %486 = vmatmul.f32.gmra.mxu0 %v215
        %v487 = vpop.f32.mrf.mxu0
        %v488 = vadd.f32 %v375, %v487
        %489 = vmatmul.f32.gmra.mxu0 %v217
        %v490 = vpop.f32.mrf.mxu0
        %v491 = vadd.f32 %v378, %v490
        %492 = vmatmul.f32.gmra.mxu0 %v219
        %v493 = vpop.f32.mrf.mxu0
        %v494 = vadd.f32 %v381, %v493
        %495 = vmatmul.f32.gmra.mxu0 %v221
        %v496 = vpop.f32.mrf.mxu0
        %v497 = vadd.f32 %v384, %v496
        %498 = vmatmul.f32.gmra.mxu0 %v223
        %v499 = vpop.f32.mrf.mxu0
        %v500 = vadd.f32 %v387, %v499
        %501 = vmatmul.f32.gmra.mxu0 %v225
        %v502 = vpop.f32.mrf.mxu0
        %v503 = vadd.f32 %v390, %v502
        %504 = vmatmul.f32.gmra.mxu0 %v227
        %v505 = vpop.f32.mrf.mxu0
        %v506 = vadd.f32 %v393, %v505
        %507 = vmatmul.f32.gmra.mxu0 %v229
        %v508 = vpop.f32.mrf.mxu0
        %v509 = vadd.f32 %v396, %v508
        %510 = vmatmul.f32.gmra.mxu0 %v231
        %v511 = vpop.f32.mrf.mxu0
        %v512 = vadd.f32 %v399, %v511
        %513 = vmatmul.f32.gmra.mxu0 %v233
        %v514 = vpop.f32.mrf.mxu0
        %v515 = vadd.f32 %v402, %v514
        %516 = vmatmul.f32.gmra.mxu0 %v235
        %v517 = vpop.f32.mrf.mxu0
        %v518 = vadd.f32 %v405, %v517
        %519 = vmatmul.f32.gmra.mxu0 %v237
        %v520 = vpop.f32.mrf.mxu0
        %v521 = vadd.f32 %v408, %v520
        %522 = vmatmul.f32.gmra.mxu0 %v239
        %v523 = vpop.f32.mrf.mxu0
        %v524 = vadd.f32 %v411, %v523
        %525 = vmatmul.f32.gmra.mxu0 %v241
        %v526 = vpop.f32.mrf.mxu0
        %v527 = vadd.f32 %v414, %v526
        %528 = vmatmul.f32.gmra.mxu0 %v243
        %v529 = vpop.f32.mrf.mxu0
        %v530 = vadd.f32 %v417, %v529
        %531 = vmatmul.f32.gmra.mxu0 %v245
        %v532 = vpop.f32.mrf.mxu0
        %v533 = vadd.f32 %v420, %v532
        %534 = vmatmul.f32.gmra.mxu0 %v247
        %v535 = vpop.f32.mrf.mxu0
        %v536 = vadd.f32 %v423, %v535
        %537 = vdwg.mxu0
        %538 = vmatpush.msra.mxu0 %v279
        %539 = vmatpush.msra.mxu0 %v277
        %540 = vmatpush.msra.mxu0 %v275
        %541 = vmatpush.msra.mxu0 %v273
        %542 = vmatpush.msra.mxu0 %v271
        %543 = vmatpush.msra.mxu0 %v269
        %544 = vmatpush.msra.mxu0 %v267
        %545 = vmatpush.msra.mxu0 %v265
        %546 = vmatpush.msra.mxu0 %v263
        %547 = vmatpush.msra.mxu0 %v261
        %548 = vmatpush.msra.mxu0 %v259
        %549 = vmatpush.msra.mxu0 %v257
        %550 = vmatpush.msra.mxu0 %v255
        %551 = vmatpush.msra.mxu0 %v253
        %552 = vmatpush.msra.mxu0 %v251
        %553 = vmatpush.msra.mxu0 %v249
        %554 = vmatmul.f32.gmra.mxu0 %v184
        %v555 = vpop.f32.mrf.mxu0
        %v556 = vadd.f32 0.0, %v555
        %557 = vmatmul.f32.gmra.mxu0 %v186
        %v558 = vpop.f32.mrf.mxu0
        %v559 = vadd.f32 0.0, %v558
        %560 = vmatmul.f32.gmra.mxu0 %v188
        %v561 = vpop.f32.mrf.mxu0
        %v562 = vadd.f32 0.0, %v561
        %563 = vmatmul.f32.gmra.mxu0 %v190
        %v564 = vpop.f32.mrf.mxu0
        %v565 = vadd.f32 0.0, %v564
        %566 = vmatmul.f32.gmra.mxu0 %v192
        %v567 = vpop.f32.mrf.mxu0
        %v568 = vadd.f32 0.0, %v567
        %569 = vmatmul.f32.gmra.mxu0 %v194
        %v570 = vpop.f32.mrf.mxu0
        %v571 = vadd.f32 0.0, %v570
        %572 = vmatmul.f32.gmra.mxu0 %v196
        %v573 = vpop.f32.mrf.mxu0
        %v574 = vadd.f32 0.0, %v573
        %575 = vmatmul.f32.gmra.mxu0 %v198
        %v576 = vpop.f32.mrf.mxu0
        %v577 = vadd.f32 0.0, %v576
        %578 = vmatmul.f32.gmra.mxu0 %v200
        %v579 = vpop.f32.mrf.mxu0
        %v580 = vadd.f32 0.0, %v579
        %581 = vmatmul.f32.gmra.mxu0 %v202
        %v582 = vpop.f32.mrf.mxu0
        %v583 = vadd.f32 0.0, %v582
        %584 = vmatmul.f32.gmra.mxu0 %v204
        %v585 = vpop.f32.mrf.mxu0
        %v586 = vadd.f32 0.0, %v585
        %587 = vmatmul.f32.gmra.mxu0 %v206
        %v588 = vpop.f32.mrf.mxu0
        %v589 = vadd.f32 0.0, %v588
        %590 = vmatmul.f32.gmra.mxu0 %v208
        %v591 = vpop.f32.mrf.mxu0
        %v592 = vadd.f32 0.0, %v591
        %593 = vmatmul.f32.gmra.mxu0 %v210
        %v594 = vpop.f32.mrf.mxu0
        %v595 = vadd.f32 0.0, %v594
        %596 = vmatmul.f32.gmra.mxu0 %v212
        %v597 = vpop.f32.mrf.mxu0
        %v598 = vadd.f32 0.0, %v597
        %599 = vmatmul.f32.gmra.mxu0 %v214
        %v600 = vpop.f32.mrf.mxu0
        %v601 = vadd.f32 0.0, %v600
        %602 = vmatmul.f32.gmra.mxu0 %v216
        %v603 = vpop.f32.mrf.mxu0
        %v604 = vadd.f32 0.0, %v603
        %605 = vmatmul.f32.gmra.mxu0 %v218
        %v606 = vpop.f32.mrf.mxu0
        %v607 = vadd.f32 0.0, %v606
        %608 = vmatmul.f32.gmra.mxu0 %v220
        %v609 = vpop.f32.mrf.mxu0
        %v610 = vadd.f32 0.0, %v609
        %611 = vmatmul.f32.gmra.mxu0 %v222
        %v612 = vpop.f32.mrf.mxu0
        %v613 = vadd.f32 0.0, %v612
        %614 = vmatmul.f32.gmra.mxu0 %v224
        %v615 = vpop.f32.mrf.mxu0
        %v616 = vadd.f32 0.0, %v615
        %617 = vmatmul.f32.gmra.mxu0 %v226
        %v618 = vpop.f32.mrf.mxu0
        %v619 = vadd.f32 0.0, %v618
        %620 = vmatmul.f32.gmra.mxu0 %v228
        %v621 = vpop.f32.mrf.mxu0
        %v622 = vadd.f32 0.0, %v621
        %623 = vmatmul.f32.gmra.mxu0 %v230
        %v624 = vpop.f32.mrf.mxu0
        %v625 = vadd.f32 0.0, %v624
        %626 = vmatmul.f32.gmra.mxu0 %v232
        %v627 = vpop.f32.mrf.mxu0
        %v628 = vadd.f32 0.0, %v627
        %629 = vmatmul.f32.gmra.mxu0 %v234
        %v630 = vpop.f32.mrf.mxu0
        %v631 = vadd.f32 0.0, %v630
        %632 = vmatmul.f32.gmra.mxu0 %v236
        %v633 = vpop.f32.mrf.mxu0
        %v634 = vadd.f32 0.0, %v633
        %635 = vmatmul.f32.gmra.mxu0 %v238
        %v636 = vpop.f32.mrf.mxu0
        %v637 = vadd.f32 0.0, %v636
        %638 = vmatmul.f32.gmra.mxu0 %v240
        %v639 = vpop.f32.mrf.mxu0
        %v640 = vadd.f32 0.0, %v639
        %641 = vmatmul.f32.gmra.mxu0 %v242
        %v642 = vpop.f32.mrf.mxu0
        %v643 = vadd.f32 0.0, %v642
        %644 = vmatmul.f32.gmra.mxu0 %v244
        %v645 = vpop.f32.mrf.mxu0
        %v646 = vadd.f32 0.0, %v645
        %647 = vmatmul.f32.gmra.mxu0 %v246
        %v648 = vpop.f32.mrf.mxu0
        %v649 = vadd.f32 0.0, %v648
        %650 = vdwg.mxu0
        %651 = vmatpush.msra.mxu0 %v311
        %652 = vmatpush.msra.mxu0 %v309
        %653 = vmatpush.msra.mxu0 %v307
        %654 = vmatpush.msra.mxu0 %v305
        %655 = vmatpush.msra.mxu0 %v303
        %656 = vmatpush.msra.mxu0 %v301
        %657 = vmatpush.msra.mxu0 %v299
        %658 = vmatpush.msra.mxu0 %v297
        %659 = vmatpush.msra.mxu0 %v295
        %660 = vmatpush.msra.mxu0 %v293
        %661 = vmatpush.msra.mxu0 %v291
        %662 = vmatpush.msra.mxu0 %v289
        %663 = vmatpush.msra.mxu0 %v287
        %664 = vmatpush.msra.mxu0 %v285
        %665 = vmatpush.msra.mxu0 %v283
        %666 = vmatpush.msra.mxu0 %v281
        %667 = vmatmul.f32.gmra.mxu0 %v185
        %v668 = vpop.f32.mrf.mxu0
        %v669 = vadd.f32 %v556, %v668
        %670 = vmatmul.f32.gmra.mxu0 %v187
        %v671 = vpop.f32.mrf.mxu0
        %v672 = vadd.f32 %v559, %v671
        %673 = vmatmul.f32.gmra.mxu0 %v189
        %v674 = vpop.f32.mrf.mxu0
        %v675 = vadd.f32 %v562, %v674
        %676 = vmatmul.f32.gmra.mxu0 %v191
        %v677 = vpop.f32.mrf.mxu0
        %v678 = vadd.f32 %v565, %v677
        %679 = vmatmul.f32.gmra.mxu0 %v193
        %v680 = vpop.f32.mrf.mxu0
        %v681 = vadd.f32 %v568, %v680
        %682 = vmatmul.f32.gmra.mxu0 %v195
        %v683 = vpop.f32.mrf.mxu0
        %v684 = vadd.f32 %v571, %v683
        %685 = vmatmul.f32.gmra.mxu0 %v197
        %v686 = vpop.f32.mrf.mxu0
        %v687 = vadd.f32 %v574, %v686
        %688 = vmatmul.f32.gmra.mxu0 %v199
        %v689 = vpop.f32.mrf.mxu0
        %v690 = vadd.f32 %v577, %v689
        %691 = vmatmul.f32.gmra.mxu0 %v201
        %v692 = vpop.f32.mrf.mxu0
        %v693 = vadd.f32 %v580, %v692
        %694 = vmatmul.f32.gmra.mxu0 %v203
        %v695 = vpop.f32.mrf.mxu0
        %v696 = vadd.f32 %v583, %v695
        %697 = vmatmul.f32.gmra.mxu0 %v205
        %v698 = vpop.f32.mrf.mxu0
        %v699 = vadd.f32 %v586, %v698
        %700 = vmatmul.f32.gmra.mxu0 %v207
        %v701 = vpop.f32.mrf.mxu0
        %v702 = vadd.f32 %v589, %v701
        %703 = vmatmul.f32.gmra.mxu0 %v209
        %v704 = vpop.f32.mrf.mxu0
        %v705 = vadd.f32 %v592, %v704
        %706 = vmatmul.f32.gmra.mxu0 %v211
        %v707 = vpop.f32.mrf.mxu0
        %v708 = vadd.f32 %v595, %v707
        %709 = vmatmul.f32.gmra.mxu0 %v213
        %v710 = vpop.f32.mrf.mxu0
        %v711 = vadd.f32 %v598, %v710
        %712 = vmatmul.f32.gmra.mxu0 %v215
        %v713 = vpop.f32.mrf.mxu0
        %v714 = vadd.f32 %v601, %v713
        %715 = vmatmul.f32.gmra.mxu0 %v217
        %v716 = vpop.f32.mrf.mxu0
        %v717 = vadd.f32 %v604, %v716
        %718 = vmatmul.f32.gmra.mxu0 %v219
        %v719 = vpop.f32.mrf.mxu0
        %v720 = vadd.f32 %v607, %v719
        %721 = vmatmul.f32.gmra.mxu0 %v221
        %v722 = vpop.f32.mrf.mxu0
        %v723 = vadd.f32 %v610, %v722
        %724 = vmatmul.f32.gmra.mxu0 %v223
        %v725 = vpop.f32.mrf.mxu0
        %v726 = vadd.f32 %v613, %v725
        %727 = vmatmul.f32.gmra.mxu0 %v225
        %v728 = vpop.f32.mrf.mxu0
        %v729 = vadd.f32 %v616, %v728
        %730 = vmatmul.f32.gmra.mxu0 %v227
        %v731 = vpop.f32.mrf.mxu0
        %v732 = vadd.f32 %v619, %v731
        %733 = vmatmul.f32.gmra.mxu0 %v229
        %v734 = vpop.f32.mrf.mxu0
        %v735 = vadd.f32 %v622, %v734
        %736 = vmatmul.f32.gmra.mxu0 %v231
        %v737 = vpop.f32.mrf.mxu0
        %v738 = vadd.f32 %v625, %v737
        %739 = vmatmul.f32.gmra.mxu0 %v233
        %v740 = vpop.f32.mrf.mxu0
        %v741 = vadd.f32 %v628, %v740
        %742 = vmatmul.f32.gmra.mxu0 %v235
        %v743 = vpop.f32.mrf.mxu0
        %v744 = vadd.f32 %v631, %v743
        %745 = vmatmul.f32.gmra.mxu0 %v237
        %v746 = vpop.f32.mrf.mxu0
        %v747 = vadd.f32 %v634, %v746
        %748 = vmatmul.f32.gmra.mxu0 %v239
        %v749 = vpop.f32.mrf.mxu0
        %v750 = vadd.f32 %v637, %v749
        %751 = vmatmul.f32.gmra.mxu0 %v241
        %v752 = vpop.f32.mrf.mxu0
        %v753 = vadd.f32 %v640, %v752
        %754 = vmatmul.f32.gmra.mxu0 %v243
        %v755 = vpop.f32.mrf.mxu0
        %v756 = vadd.f32 %v643, %v755
        %757 = vmatmul.f32.gmra.mxu0 %v245
        %v758 = vpop.f32.mrf.mxu0
        %v759 = vadd.f32 %v646, %v758
        %760 = vmatmul.f32.gmra.mxu0 %v247
        %v761 = vpop.f32.mrf.mxu0
        %v762 = vadd.f32 %v649, %v761
        %763 = vdwg.mxu0
        %764 = vst [vmem:[%s181] sm:$0xff] %v443
        %765 = vst [vmem:[%s181 + $0x8] sm:$0xff] %v669
        %766 = vst [vmem:[%s181 + $0x10] sm:$0xff] %v446
        %767 = vst [vmem:[%s181 + $0x18] sm:$0xff] %v672
        %768 = vst [vmem:[%s181 + $0x20] sm:$0xff] %v449
        %769 = vst [vmem:[%s181 + $0x28] sm:$0xff] %v675
        %770 = vst [vmem:[%s181 + $0x30] sm:$0xff] %v452
        %771 = vst [vmem:[%s181 + $0x38] sm:$0xff] %v678
        %772 = vst [vmem:[%s181 + $0x40] sm:$0xff] %v455
        %773 = vst [vmem:[%s181 + $0x48] sm:$0xff] %v681
        %774 = vst [vmem:[%s181 + $0x50] sm:$0xff] %v458
        %775 = vst [vmem:[%s181 + $0x58] sm:$0xff] %v684
        %776 = vst [vmem:[%s181 + $0x60] sm:$0xff] %v461
        %777 = vst [vmem:[%s181 + $0x68] sm:$0xff] %v687
        %778 = vst [vmem:[%s181 + $0x70] sm:$0xff] %v464
        %779 = vst [vmem:[%s181 + $0x78] sm:$0xff] %v690
        %780 = vst [vmem:[%s181 + $0x80] sm:$0xff] %v467
        %781 = vst [vmem:[%s181 + $0x88] sm:$0xff] %v693
        %782 = vst [vmem:[%s181 + $0x90] sm:$0xff] %v470
        %783 = vst [vmem:[%s181 + $0x98] sm:$0xff] %v696
        %784 = vst [vmem:[%s181 + $0xa0] sm:$0xff] %v473
        %785 = vst [vmem:[%s181 + $0xa8] sm:$0xff] %v699
        %786 = vst [vmem:[%s181 + $0xb0] sm:$0xff] %v476
        %787 = vst [vmem:[%s181 + $0xb8] sm:$0xff] %v702
        %788 = vst [vmem:[%s181 + $0xc0] sm:$0xff] %v479
        %789 = vst [vmem:[%s181 + $0xc8] sm:$0xff] %v705
        %790 = vst [vmem:[%s181 + $0xd0] sm:$0xff] %v482
        %791 = vst [vmem:[%s181 + $0xd8] sm:$0xff] %v708
        %792 = vst [vmem:[%s181 + $0xe0] sm:$0xff] %v485
        %793 = vst [vmem:[%s181 + $0xe8] sm:$0xff] %v711
        %794 = vst [vmem:[%s181 + $0xf0] sm:$0xff] %v488
        %795 = vst [vmem:[%s181 + $0xf8] sm:$0xff] %v714
        %796 = vst [vmem:[%s181 + $0x100] sm:$0xff] %v491
        %797 = vst [vmem:[%s181 + $0x108] sm:$0xff] %v717
        %798 = vst [vmem:[%s181 + $0x110] sm:$0xff] %v494
        %799 = vst [vmem:[%s181 + $0x118] sm:$0xff] %v720
        %800 = vst [vmem:[%s181 + $0x120] sm:$0xff] %v497
        %801 = vst [vmem:[%s181 + $0x128] sm:$0xff] %v723
        %802 = vst [vmem:[%s181 + $0x130] sm:$0xff] %v500
        %803 = vst [vmem:[%s181 + $0x138] sm:$0xff] %v726
        %804 = vst [vmem:[%s181 + $0x140] sm:$0xff] %v503
        %805 = vst [vmem:[%s181 + $0x148] sm:$0xff] %v729
        %806 = vst [vmem:[%s181 + $0x150] sm:$0xff] %v506
        %807 = vst [vmem:[%s181 + $0x158] sm:$0xff] %v732
        %808 = vst [vmem:[%s181 + $0x160] sm:$0xff] %v509
        %809 = vst [vmem:[%s181 + $0x168] sm:$0xff] %v735
        %810 = vst [vmem:[%s181 + $0x170] sm:$0xff] %v512
        %811 = vst [vmem:[%s181 + $0x178] sm:$0xff] %v738
        %812 = vst [vmem:[%s181 + $0x180] sm:$0xff] %v515
        %813 = vst [vmem:[%s181 + $0x188] sm:$0xff] %v741
        %814 = vst [vmem:[%s181 + $0x190] sm:$0xff] %v518
        %815 = vst [vmem:[%s181 + $0x198] sm:$0xff] %v744
        %816 = vst [vmem:[%s181 + $0x1a0] sm:$0xff] %v521
        %817 = vst [vmem:[%s181 + $0x1a8] sm:$0xff] %v747
        %818 = vst [vmem:[%s181 + $0x1b0] sm:$0xff] %v524
        %819 = vst [vmem:[%s181 + $0x1b8] sm:$0xff] %v750
        %820 = vst [vmem:[%s181 + $0x1c0] sm:$0xff] %v527
        %821 = vst [vmem:[%s181 + $0x1c8] sm:$0xff] %v753
        %822 = vst [vmem:[%s181 + $0x1d0] sm:$0xff] %v530
        %823 = vst [vmem:[%s181 + $0x1d8] sm:$0xff] %v756
        %824 = vst [vmem:[%s181 + $0x1e0] sm:$0xff] %v533
        %825 = vst [vmem:[%s181 + $0x1e8] sm:$0xff] %v759
        %826 = vst [vmem:[%s181 + $0x1f0] sm:$0xff] %v536
        %827 = vst [vmem:[%s181 + $0x1f8] sm:$0xff] %v762
        %s828 = sand.u32 %s75, 1
        %s829 = scalar_lea.sflag [#allocation4], %s828
        %s830 = sand.u32 %s75, 1
        %s831 = smul.addr %s830, 512
        %s832 = scalar_lea.vmem [#allocation7], %s831
        // Predicated region
        $region37: #{tpu_custom_call.1} parent=27 // pred_check
          %p833 = pneg %p85
        $region38: #{tpu_custom_call.1} parent=27 // pred_check_branch
          %835 = sbr.rel (%p833) target = $region40
        $region39: #{tpu_custom_call.1} parent=27 // pred_region
          %s836 = smul.u32 32, %s20
          %838 = vsyncadd %s829, 0
          %s839 = smul.addr %s836, 2
          %s840 = smul.addr %s839, 8
          %s841 = scalar_lea.hbm %s2, %s840
          %s842 = sshll.u32 %s832, 4
          %s843 = int_to_ptr.vmem [resolvable:$true] %s842
          %s844 = sshll.u32 %s841, 4
          %s845 = int_to_ptr.hbm [resolvable:$true] %s844
          %850 = dma.vmem_to_hbm [thread:$0]  %s843, 8192, %s845, %s829, 256, 256, 16
        $region40: #{tpu_custom_call.1} parent=27 // pred_fallthru
          _
      $region28: #{tpu_custom_call.1} parent=5 // pred_fallthru
        _
      %p851 = scmp.le.s32.totalorder 2, %s15
      // Predicated region
      $region41: #{tpu_custom_call.1} parent=5 // pred_check
        %p852 = pneg %p851
      $region42: #{tpu_custom_call.1} parent=5 // pred_check_branch
        %854 = sbr.rel (%p852) target = $region44
      $region43: #{tpu_custom_call.1} parent=5 // pred_region
        %s855 = ssub.s32 %s15, 2
        // Predicated region
        $region45: #{tpu_custom_call.1} parent=43 // pred_check
          %p856 = pneg %p91
        $region46: #{tpu_custom_call.1} parent=43 // pred_check_branch
          %858 = sbr.rel (%p856) target = $region48
        $region47: #{tpu_custom_call.1} parent=43 // pred_region
          %s859 = sand.u32 %s76, 1
          %s860 = scalar_lea.sflag [#allocation4], %s859
          %s861 = sand.u32 %s76, 1
          %s862 = smul.addr %s861, 512
          %s863 = scalar_lea.vmem [#allocation7], %s862
          %865 = dma.done %s860, 8192
        $region48: #{tpu_custom_call.1} parent=43 // pred_fallthru
          _
      $region44: #{tpu_custom_call.1} parent=5 // pred_fallthru
        _
    $region6: #{tpu_custom_call.1} parent=1 // loop_footer
      %s19 = sadd.s32 1, %s15
    $region7: #{tpu_custom_call.1} parent=1 // loop_footer_branch
      %14 = sbr.rel target = $region3
    $region8: #{tpu_custom_call.1} parent=1 // loop_exit
      _
    %866 = vsyncpa [#allocation3], 1
    %s867 = scalar_lea.sflag [#allocation3], 1
    %868 = vsyncpa %s867, 1
    %869 = vsyncpa [#allocation6], 1
    %870 = vsyncpa [#allocation4], 1
    %s871 = scalar_lea.sflag [#allocation4], 1
    %872 = vsyncpa %s871, 1

</llo_original>
